<compile_context>
chip_gen: v7x
topology: tpu7x:2x2x1
jax: 0.10.0
libtpu: 0.0.40
codegen_flags: <defaults>
</compile_context>

<pallas_src>
import functools

import jax
import jax.numpy as jnp
from jax import lax
from jax.experimental import pallas as pl
from jax.experimental.pallas import tpu as pltpu


def _pack_skip_block_params(w_hwio, bias, width):
    """Fold the 3x3 conv into three block-Toeplitz matrices (done once per model).

    Returns:
      m    : (3, W*Cin, W*Cout) -- m[dh+1] maps one input row (lane layout
             w*Cin + ci) to the dh-tap contribution of the matching output row
             (lane layout w*Cout + co). Horizontal zero-padding is baked in
             (the +/-1 band is truncated at the w edges).
      brow : (1, W*Cout) bias broadcast to the same lane layout.
    """
    kh, kw, cin, cout = w_hwio.shape
    assert (kh, kw) == (3, 3)
    w_idx = jnp.arange(width)
    diff = w_idx[:, None] - w_idx[None, :]           # win - wout
    tap = diff + 1                                   # kw index for this (win, wout)
    valid = (tap >= 0) & (tap <= 2)
    tap = jnp.clip(tap, 0, 2)
    # m3[dh, win, wout, ci, co] = w[dh, win-wout+1, ci, co] if |win-wout| <= 1 else 0
    m3 = w_hwio[:, tap, :, :] * valid[None, :, :, None, None].astype(w_hwio.dtype)
    m = jnp.transpose(m3, (0, 1, 3, 2, 4)).reshape(3, width * cin, width * cout)
    brow = jnp.broadcast_to(bias, (width, cout)).reshape(1, width * cout)
    return m, brow


def _skip_block_kernel(x_ref, m_ref, b_ref, o_ref, *, cin, cout):
    """One grid step = one (batch, row-strip).

    x_ref : (1, H, W*Cin)       full image for this batch, VMEM-resident across
                                the strip axis (constant index_map -> one DMA).
    m_ref : (3, W*Cin, W*Cout)  block-Toeplitz conv matrices (dh = -1, 0, +1).
    b_ref : (1, W*Cout)         bias in the same lane layout.
    o_ref : (1, TILE_H, W*(Cout+Cin))  lane-dense output strip.
    """
    tile_h = o_ref.shape[1]
    h_total = x_ref.shape[1]
    wci = x_ref.shape[2]
    width = wci // cin

    s = pl.multiple_of(pl.program_id(1) * tile_h, tile_h)   # first row of strip

    xc = x_ref[0, pl.ds(s, tile_h), :]                       # rows s .. s+T-1

    # Neighbour rows for the vertical halo (zero row at the image border).
    prev = x_ref[0, pl.ds(jnp.maximum(s - 1, 0), 1), :]
    prev = prev * (s > 0).astype(prev.dtype)
    nxt = x_ref[0, pl.ds(jnp.minimum(s + tile_h, h_total - 1), 1), :]
    nxt = nxt * (s + tile_h < h_total).astype(nxt.dtype)

    xu = jnp.concatenate([prev, xc[:-1, :]], axis=0)         # row r = x[s+r-1]
    xd = jnp.concatenate([xc[1:, :], nxt], axis=0)           # row r = x[s+r+1]

    # 3x3 conv == sum of the three vertical taps, each one MXU matmul.
    acc = jnp.dot(xu, m_ref[0], preferred_element_type=jnp.float32)
    acc = acc + jnp.dot(xc, m_ref[1], preferred_element_type=jnp.float32)
    acc = acc + jnp.dot(xd, m_ref[2], preferred_element_type=jnp.float32)

    main = jnp.maximum(acc + b_ref[0, :], 0.0)               # (T, W*Cout)

    # torch.cat([main, skip], dim=channels): interleave per pixel and emit a
    # single unmasked lane-dense store (last dim = W*(Cout+Cin)).
    out = jnp.concatenate(
        [main.reshape(tile_h, width, cout), xc.reshape(tile_h, width, cin)],
        axis=-1,
    ).reshape(tile_h, width * (cout + cin))
    o_ref[0, :, :] = out.astype(o_ref.dtype)


def skip_block_forward_nhwc(x_nhwc, w_hwio, bias, *, tile_h=8):
    """NHWC-native forward: (B, H, W, Cin) -> (B, H, W, Cout + Cin)."""
    b, h, w, cin = x_nhwc.shape
    cout = w_hwio.shape[-1]
    cc = cout + cin
    assert h % tile_h == 0 and tile_h % 8 == 0, (h, tile_h)

    x2d = x_nhwc.reshape(b, h, w * cin)                      # lane-dense input view
    m, brow = _pack_skip_block_params(w_hwio, bias, w)

    kernel = functools.partial(_skip_block_kernel, cin=cin, cout=cout)
    out2d = pl.pallas_call(
        kernel,
        out_shape=jax.ShapeDtypeStruct((b, h, w * cc), x_nhwc.dtype),
        grid_spec=pltpu.PrefetchScalarGridSpec(
            num_scalar_prefetch=0,
            grid=(b, h // tile_h),
            in_specs=[
                # Full (small) image resident per batch; re-used across strips.
                pl.BlockSpec((1, h, w * cin), lambda bi, si: (bi, 0, 0)),
                # Weight matrices / bias: constant index_map -> fetched once.
                pl.BlockSpec((3, w * cin, w * cout), lambda bi, si: (0, 0, 0)),
                pl.BlockSpec((1, w * cout), lambda bi, si: (0, 0)),
            ],
            out_specs=pl.BlockSpec((1, tile_h, w * cc), lambda bi, si: (bi, si, 0)),
        ),
        compiler_params=pltpu.CompilerParams(
            dimension_semantics=("parallel", "parallel"),
        ),
    )(x2d, m, brow)
    return out2d.reshape(b, h, w, cc)


def skip_block_forward(x_nchw, w_hwio, bias, *, tile_h=8):
    """NCHW wrapper matching torch.cat(..., dim=1) semantics.

    In a full model, keep activations NHWC end-to-end and call
    skip_block_forward_nhwc directly; these transposes exist only to mirror
    the PyTorch axis convention at the module boundary.
    """
    out_nhwc = skip_block_forward_nhwc(
        jnp.transpose(x_nchw, (0, 2, 3, 1)), w_hwio, bias, tile_h=tile_h)
    return jnp.transpose(out_nhwc, (0, 3, 1, 2))


def _reference(x_nchw, w_hwio, bias):
    """Pure-JAX reference of the same SkipBlock forward (NCHW in / out)."""
    x_nhwc = jnp.transpose(x_nchw, (0, 2, 3, 1))
    conv = lax.conv_general_dilated(
        x_nhwc, w_hwio, window_strides=(1, 1), padding="SAME",
        dimension_numbers=("NHWC", "HWIO", "NHWC"),
    ) + bias
    main = jnp.maximum(conv, 0.0)
    out_nhwc = jnp.concatenate([main, x_nhwc], axis=-1)
    return jnp.transpose(out_nhwc, (0, 3, 1, 2))


if __name__ == "__main__":
    B, Cin, H, W = 2, 4, 16, 16
    Cout = 4

    key = jax.random.PRNGKey(0)
    kx, kw, kb = jax.random.split(key, 3)
    x = jax.random.normal(kx, (B, Cin, H, W), dtype=jnp.float32)
    w = jax.random.normal(kw, (3, 3, Cin, Cout), dtype=jnp.float32) * (
        1.0 / (3.0 * 3.0 * Cin) ** 0.5
    )
    b = jax.random.normal(kb, (Cout,), dtype=jnp.float32) * 0.01

    out = jax.block_until_ready(skip_block_forward(x, w, b))
    ref = jax.block_until_ready(_reference(x, w, b))

    assert out.shape == (B, Cout + Cin, H, W), out.shape
    max_err = float(jnp.max(jnp.abs(out - ref)))
    assert jnp.allclose(out, ref, atol=1e-4, rtol=1e-4), f"mismatch: {max_err}"
    print("KERNEL_OK")
</pallas_src>

<mosaic_0001>
module attributes {stable_mosaic.version = 11 : i64} {
  func.func @_skip_block_kernel(%arg0: i32, %arg1: i32, %arg2: memref<1x16x64xf32, #tpu.memory_space<vmem>>, %arg3: memref<3x64x64xf32, #tpu.memory_space<vmem>>, %arg4: memref<1x64xf32, #tpu.memory_space<vmem>>, %arg5: memref<1x8x128xf32, #tpu.memory_space<vmem>>) attributes {dimension_semantics = [#tpu.dimension_semantics<parallel>, #tpu.dimension_semantics<parallel>], iteration_bounds = array<i64: 2, 2>, scalar_prefetch = 0 : i64, scratch_operands = 0 : i64, tpu.core_type = #tpu.core_type<tc>, window_params = [{transform_indices = @transform_0, window_bounds = array<i64: 1, 16, 64>}, {pipeline_mode = #tpu.pipeline_mode<synchronous>, transform_indices = @transform_1, window_bounds = array<i64: 3, 64, 64>}, {pipeline_mode = #tpu.pipeline_mode<synchronous>, transform_indices = @transform_2, window_bounds = array<i64: 1, 64>}, {transform_indices = @transform_3, window_bounds = array<i64: 1, 8, 128>}]} {
    %c8_i32 = arith.constant 8 : i32
    %0 = arith.muli %arg1, %c8_i32 : i32
    %1 = tpu.assume_multiple %0, 8 : i32
    %c0 = arith.constant 0 : index
    %2 = arith.index_cast %1 : i32 to index
    %c0_0 = arith.constant 0 : index
    %3 = vector.load %arg2[%c0, %2, %c0_0] : memref<1x16x64xf32, #tpu.memory_space<vmem>>, vector<1x8x64xf32>
    %4 = vector.shape_cast %3 : vector<1x8x64xf32> to vector<8x64xf32>
    %c1_i32 = arith.constant 1 : i32
    %5 = arith.subi %1, %c1_i32 : i32
    %c0_i32 = arith.constant 0 : i32
    %6 = arith.maxsi %5, %c0_i32 : i32
    %c0_1 = arith.constant 0 : index
    %7 = arith.index_cast %6 : i32 to index
    %c0_2 = arith.constant 0 : index
    %8 = vector.load %arg2[%c0_1, %7, %c0_2] : memref<1x16x64xf32, #tpu.memory_space<vmem>>, vector<1x1x64xf32>
    %9 = vector.shape_cast %8 : vector<1x1x64xf32> to vector<1x64xf32>
    %c0_i32_3 = arith.constant 0 : i32
    %10 = arith.cmpi sgt, %1, %c0_i32_3 : i32
    %11 = arith.extui %10 : i1 to i32
    %12 = arith.sitofp %11 : i32 to f32
    %13 = vector.broadcast %12 : f32 to vector<1x64xf32>
    %14 = arith.mulf %9, %13 : vector<1x64xf32>
    %c8_i32_4 = arith.constant 8 : i32
    %15 = arith.addi %1, %c8_i32_4 : i32
    %c15_i32 = arith.constant 15 : i32
    %16 = arith.minsi %15, %c15_i32 : i32
    %c0_5 = arith.constant 0 : index
    %17 = arith.index_cast %16 : i32 to index
    %c0_6 = arith.constant 0 : index
    %18 = vector.load %arg2[%c0_5, %17, %c0_6] : memref<1x16x64xf32, #tpu.memory_space<vmem>>, vector<1x1x64xf32>
    %19 = vector.shape_cast %18 : vector<1x1x64xf32> to vector<1x64xf32>
    %c8_i32_7 = arith.constant 8 : i32
    %20 = arith.addi %1, %c8_i32_7 : i32
    %c16_i32 = arith.constant 16 : i32
    %21 = arith.cmpi slt, %20, %c16_i32 : i32
    %22 = arith.extui %21 : i1 to i32
    %23 = arith.sitofp %22 : i32 to f32
    %24 = vector.broadcast %23 : f32 to vector<1x64xf32>
    %25 = arith.mulf %19, %24 : vector<1x64xf32>
    %26 = vector.extract_strided_slice %4 {offsets = [0, 0], sizes = [7, 64], strides = [1, 1]} : vector<8x64xf32> to vector<7x64xf32>
    %27 = tpu.concatenate %14, %26 in 0 : vector<1x64xf32>, vector<7x64xf32> -> vector<8x64xf32>
    %28 = vector.extract_strided_slice %4 {offsets = [1, 0], sizes = [7, 64], strides = [1, 1]} : vector<8x64xf32> to vector<7x64xf32>
    %29 = tpu.concatenate %28, %25 in 0 : vector<7x64xf32>, vector<1x64xf32> -> vector<8x64xf32>
    %c0_8 = arith.constant 0 : index
    %c0_9 = arith.constant 0 : index
    %c0_10 = arith.constant 0 : index
    %30 = vector.load %arg3[%c0_8, %c0_9, %c0_10] : memref<3x64x64xf32, #tpu.memory_space<vmem>>, vector<1x64x64xf32>
    %31 = vector.shape_cast %30 : vector<1x64x64xf32> to vector<64x64xf32>
    %cst = arith.constant dense<0.000000e+00> : vector<8x64xf32>
    %32 = tpu.matmul %27, %31, %cst {dimension_numbers = #tpu.dot_dimension_numbers<[1], [0], [0], [1], [0, 0, 1, 1], [], []>} : vector<8x64xf32>, vector<64x64xf32>, vector<8x64xf32> -> vector<8x64xf32>
    %c1 = arith.constant 1 : index
    %c0_11 = arith.constant 0 : index
    %c0_12 = arith.constant 0 : index
    %33 = vector.load %arg3[%c1, %c0_11, %c0_12] : memref<3x64x64xf32, #tpu.memory_space<vmem>>, vector<1x64x64xf32>
    %34 = vector.shape_cast %33 : vector<1x64x64xf32> to vector<64x64xf32>
    %cst_13 = arith.constant dense<0.000000e+00> : vector<8x64xf32>
    %35 = tpu.matmul %4, %34, %cst_13 {dimension_numbers = #tpu.dot_dimension_numbers<[1], [0], [0], [1], [0, 0, 1, 1], [], []>} : vector<8x64xf32>, vector<64x64xf32>, vector<8x64xf32> -> vector<8x64xf32>
    %36 = arith.addf %32, %35 : vector<8x64xf32>
    %c2 = arith.constant 2 : index
    %c0_14 = arith.constant 0 : index
    %c0_15 = arith.constant 0 : index
    %37 = vector.load %arg3[%c2, %c0_14, %c0_15] : memref<3x64x64xf32, #tpu.memory_space<vmem>>, vector<1x64x64xf32>
    %38 = vector.shape_cast %37 : vector<1x64x64xf32> to vector<64x64xf32>
    %cst_16 = arith.constant dense<0.000000e+00> : vector<8x64xf32>
    %39 = tpu.matmul %29, %38, %cst_16 {dimension_numbers = #tpu.dot_dimension_numbers<[1], [0], [0], [1], [0, 0, 1, 1], [], []>} : vector<8x64xf32>, vector<64x64xf32>, vector<8x64xf32> -> vector<8x64xf32>
    %40 = arith.addf %36, %39 : vector<8x64xf32>
    %c0_17 = arith.constant 0 : index
    %c0_18 = arith.constant 0 : index
    %41 = vector.load %arg4[%c0_17, %c0_18] : memref<1x64xf32, #tpu.memory_space<vmem>>, vector<1x64xf32>
    %42 = vector.shape_cast %41 : vector<1x64xf32> to vector<64xf32>
    %43 = vector.shape_cast %42 : vector<64xf32> to vector<1x64xf32>
    %44 = vector.broadcast %43 : vector<1x64xf32> to vector<8x64xf32>
    %45 = arith.addf %40, %44 : vector<8x64xf32>
    %cst_19 = arith.constant 0.000000e+00 : f32
    %46 = vector.broadcast %cst_19 : f32 to vector<8x64xf32>
    %47 = arith.maximumf %45, %46 : vector<8x64xf32>
    %48 = vector.shape_cast %47 : vector<8x64xf32> to vector<8x16x4xf32>
    %49 = vector.shape_cast %4 : vector<8x64xf32> to vector<8x16x4xf32>
    %50 = tpu.concatenate %48, %49 in 2 : vector<8x16x4xf32>, vector<8x16x4xf32> -> vector<8x16x8xf32>
    %51 = vector.shape_cast %50 : vector<8x16x8xf32> to vector<8x128xf32>
    %c0_20 = arith.constant 0 : index
    %c0_21 = arith.constant 0 : index
    %c0_22 = arith.constant 0 : index
    %52 = vector.load %arg5[%c0_20, %c0_21, %c0_22] : memref<1x8x128xf32, #tpu.memory_space<vmem>>, vector<1x8x128xf32>
    %53 = vector.shape_cast %52 : vector<1x8x128xf32> to vector<8x128xf32>
    %54 = vector.shape_cast %51 : vector<8x128xf32> to vector<1x8x128xf32>
    tpu.vector_store %arg5[%c0_20, %c0_21, %c0_22], %54 {strides = array<i32>} : memref<1x8x128xf32, #tpu.memory_space<vmem>>, vector<1x8x128xf32>,
    return
  }
  func.func @transform_0(%arg0: i32, %arg1: i32) -> (i32, i32, i32) {
    %c0_i32 = arith.constant 0 : i32
    %c0_i32_0 = arith.constant 0 : i32
    %c0_i32_1 = arith.constant 0 : i32
    return %arg0, %c0_i32, %c0_i32_0 : i32, i32, i32
  }
  func.func @transform_1(%arg0: i32, %arg1: i32) -> (i32, i32, i32) {
    %c0_i32 = arith.constant 0 : i32
    %c0_i32_0 = arith.constant 0 : i32
    %c0_i32_1 = arith.constant 0 : i32
    %c0_i32_2 = arith.constant 0 : i32
    return %c0_i32, %c0_i32_0, %c0_i32_1 : i32, i32, i32
  }
  func.func @transform_2(%arg0: i32, %arg1: i32) -> (i32, i32) {
    %c0_i32 = arith.constant 0 : i32
    %c0_i32_0 = arith.constant 0 : i32
    %c0_i32_1 = arith.constant 0 : i32
    return %c0_i32, %c0_i32_0 : i32, i32
  }
  func.func @transform_3(%arg0: i32, %arg1: i32) -> (i32, i32, i32) {
    %c0_i32 = arith.constant 0 : i32
    %c0_i32_0 = arith.constant 0 : i32
    return %arg0, %arg1, %c0_i32 : i32, i32, i32
  }
}

</mosaic_0001>

<llo_original>
// kernel: tpu_custom_call.1
$region0: #{tpu_custom_call.1}
  #allocation0 [shape = 'u32[]', space=smem, size = 0x4, offset = 0x4, fixed_abs, tag = 'smem constant byte address 0x4 - core index']
  #allocation1 [shape = 'u32[144,128]{1,0:T(1,128)}', space=vmem, size = 0x12000, scoped, tag = 'internal scratch']
  %s0 = inlined_call_operand.hbm [shape: f32[2,16,64], index: 0, kind: input, shape index: {}]
  %s1 = inlined_call_operand.hbm [shape: f32[3,64,64], index: 1, kind: input, shape index: {}]
  %s2 = inlined_call_operand.vmem [shape: f32[1,64], index: 2, kind: input, shape index: {}]
  %s3 = inlined_call_operand.hbm [shape: f32[2,16,128], index: 3, kind: output, shape index: {}]
  %s4 = sld [smem:[#allocation0]]
  $region53: #{tpu_custom_call.1} parent=0
    _
  %s6 = ssub.s32 1, %s4
  %s7 = scalar_select 0, %s6, %s4
  $region1: #{tpu_custom_call.1} parent=0
    #allocation2 [shape = 'u8[16384]{0}', space=vmem, size = 0x4000, scoped, tag = 'input window, operand 0']
    #allocation3 [shape = 's32[2]{0}', space=sflag, size = 0x8, scoped, tag = 'scoped memory for tpu_custom_call.1']
    #allocation4 [shape = 's32[2]{0}', space=sflag, size = 0x8, scoped, tag = 'scoped memory for tpu_custom_call.1']
    #allocation5 [shape = 'u8[98304]{0}', space=vmem, size = 0x18000, scoped, tag = 'input window, operand 1, single buffered']
    #allocation6 [shape = 's32[1]{0}', space=sflag, size = 0x4, scoped, tag = 'scoped memory for tpu_custom_call.1']
    #allocation7 [shape = 'u8[8192]{0}', space=vmem, size = 0x2000, scoped, tag = 'output window, operand 0']
    %8 = vsyncpa [#allocation3], 0
    %s9 = scalar_lea.sflag [#allocation3], 1
    %10 = vsyncpa %s9, 0
    %11 = vsyncpa [#allocation6], 0
    %12 = vsyncpa [#allocation4], 0
    %s13 = scalar_lea.sflag [#allocation4], 1
    %14 = vsyncpa %s13, 0
    loop: start=0, step=1, limit=6
    $region2: #{tpu_custom_call.1} parent=1 // loop_pre_header
      _
    $region3: #{tpu_custom_call.1} parent=1 // loop_header
      %s16 = sphi 0, %s20
      %p17 = scmp.ge.s32.totalorder %s16, 6
      %s23 = sphi 0, %s35
      %s24 = sphi 0, %s31
      %s25 = sphi 0, %s23
      %s26 = sphi 0, %s24
      %s27 = sphi 0, %s25
      %s28 = sphi 0, %s26
      %s38 = sphi 0, %s40
      %s41 = sphi 0, %s38
      %s42 = sphi 0, %s41
      %s58 = sphi 0, %s42
      %s62 = sphi 0, %s62
      %s64 = sphi 0, %s62
      %s65 = sphi 0, %s64
      %s79 = sphi 0, %s65
      %s83 = sphi 0, %s83
      %s85 = sphi 0, %s83
      %s86 = sphi 0, %s85
      %s100 = sphi 0, %s86
      %s108 = sphi 0, %s110
      %s111 = sphi 0, %s108
      %s112 = sphi 0, %s111
      %s128 = sphi 0, %s112
    $region4: #{tpu_custom_call.1} parent=1 // loop_header_branch
      %19 = sbr.rel (%p17) target = $region8
    $region5: #{tpu_custom_call.1} parent=1 // loop_body
      %s21 = ssub.s32 %s16, 1
      %s22 = ssub.s32 %s16, 2
      %s29 = sadd.s32 1, %s24
      %p30 = scmp.ge.s32.totalorder %s29, 2
      %s31 = scalar_select %p30, 0, %s29
      %s32 = sadd.s32 1, %s23
      %s33 = scalar_select %p30, %s32, %s23
      %p34 = scmp.ge.s32.totalorder %s33, 2
      %s35 = scalar_select %p34, 0, %s33
      %s36 = ssub.s32 %s23, %s35
      %p37 = scmp.eq.s32.totalorder %s36, 0
      %s39 = sadd.s32 %s38, 1
      %s40 = scalar_select %p37, %s38, %s39
      %p43 = pneg %p37
      %p44 = scmp.eq.s32.totalorder %s16, 3
      %p45 = por %p43, %p44
      %p46 = scmp.ne.s32.totalorder %s38, %s41
      %p47 = scmp.eq.s32.totalorder %s16, 0
      %p48 = por %p46, %p47
      %p49 = scmp.ne.s32.totalorder %s38, %s41
      %p50 = scmp.eq.s32.totalorder %s21, 3
      %p51 = por %p49, %p50
      %p52 = scmp.ne.s32.totalorder %s41, %s42
      %p53 = scmp.eq.s32.totalorder %s21, 0
      %p54 = por %p52, %p53
      %p55 = scmp.ne.s32.totalorder %s41, %s42
      %p56 = scmp.eq.s32.totalorder %s22, 3
      %p57 = por %p55, %p56
      %p59 = scmp.ne.s32.totalorder %s42, %s58
      %p60 = scmp.eq.s32.totalorder %s22, 0
      %p61 = por %p59, %p60
      %s63 = sadd.s32 %s62, 1
      %p66 = scmp.eq.s32.totalorder %s16, 3
      %p67 = scmp.ne.s32.totalorder %s62, %s64
      %p68 = scmp.eq.s32.totalorder %s16, 0
      %p69 = por %p67, %p68
      %p70 = scmp.ne.s32.totalorder %s62, %s64
      %p71 = scmp.eq.s32.totalorder %s21, 3
      %p72 = por %p70, %p71
      %p73 = scmp.ne.s32.totalorder %s64, %s65
      %p74 = scmp.eq.s32.totalorder %s21, 0
      %p75 = por %p73, %p74
      %p76 = scmp.ne.s32.totalorder %s64, %s65
      %p77 = scmp.eq.s32.totalorder %s22, 3
      %p78 = por %p76, %p77
      %p80 = scmp.ne.s32.totalorder %s65, %s79
      %p81 = scmp.eq.s32.totalorder %s22, 0
      %p82 = por %p80, %p81
      %s84 = sadd.s32 %s83, 1
      %p87 = scmp.eq.s32.totalorder %s16, 3
      %p88 = scmp.ne.s32.totalorder %s83, %s85
      %p89 = scmp.eq.s32.totalorder %s16, 0
      %p90 = por %p88, %p89
      %p91 = scmp.ne.s32.totalorder %s83, %s85
      %p92 = scmp.eq.s32.totalorder %s21, 3
      %p93 = por %p91, %p92
      %p94 = scmp.ne.s32.totalorder %s85, %s86
      %p95 = scmp.eq.s32.totalorder %s21, 0
      %p96 = por %p94, %p95
      %p97 = scmp.ne.s32.totalorder %s85, %s86
      %p98 = scmp.eq.s32.totalorder %s22, 3
      %p99 = por %p97, %p98
      %p101 = scmp.ne.s32.totalorder %s86, %s100
      %p102 = scmp.eq.s32.totalorder %s22, 0
      %p103 = por %p101, %p102
      %s104 = ssub.s32 %s23, %s35
      %s105 = ssub.s32 %s24, %s31
      %s106 = sor.u32 %s104, %s105
      %p107 = scmp.eq.s32.totalorder %s106, 0
      %s109 = sadd.s32 %s108, 1
      %s110 = scalar_select %p107, %s108, %s109
      %p113 = pneg %p107
      %p114 = scmp.eq.s32.totalorder %s16, 3
      %p115 = por %p113, %p114
      %p116 = scmp.ne.s32.totalorder %s108, %s111
      %p117 = scmp.eq.s32.totalorder %s16, 0
      %p118 = por %p116, %p117
      %p119 = scmp.ne.s32.totalorder %s108, %s111
      %p120 = scmp.eq.s32.totalorder %s21, 3
      %p121 = por %p119, %p120
      %p122 = scmp.ne.s32.totalorder %s111, %s112
      %p123 = scmp.eq.s32.totalorder %s21, 0
      %p124 = por %p122, %p123
      %p125 = scmp.ne.s32.totalorder %s111, %s112
      %p126 = scmp.eq.s32.totalorder %s22, 3
      %p127 = por %p125, %p126
      %p129 = scmp.ne.s32.totalorder %s112, %s128
      %p130 = scmp.eq.s32.totalorder %s22, 0
      %p131 = por %p129, %p130
      %p132 = scmp.le.s32.totalorder 1, %s16
      %p133 = scmp.lt.s32.totalorder %s16, 5
      %p134 = pnand %p132, %p133
      %p135 = pneg %p134
      // Predicated region
      $region9: #{tpu_custom_call.1} parent=5 // pred_check
        _
      $region10: #{tpu_custom_call.1} parent=5 // pred_check_branch
        %137 = sbr.rel (%p134) target = $region12
      $region11: #{tpu_custom_call.1} parent=5 // pred_region
        %s138 = ssub.s32 %s16, 1
        // Predicated region
        $region13: #{tpu_custom_call.1} parent=11 // pred_check
          %p139 = pneg %p75
        $region14: #{tpu_custom_call.1} parent=11 // pred_check_branch
          %141 = sbr.rel (%p139) target = $region16
        $region15: #{tpu_custom_call.1} parent=11 // pred_region
          %s143 = ssub.s32 3072, 3072
          %144 = vsyncadd [#allocation6], %s143
          %s145 = sshll.u32 [#allocation5], 4
          %s146 = int_to_ptr.vmem [resolvable:$true] %s145
          %151 = dma.hbm_to_vmem [thread:$0]  %s1, 3072, %s146, [#allocation6], 128, 128, 8
        $region16: #{tpu_custom_call.1} parent=11 // pred_fallthru
          _
        // Predicated region
        $region17: #{tpu_custom_call.1} parent=11 // pred_check
          %p152 = pneg %p96
        $region18: #{tpu_custom_call.1} parent=11 // pred_check_branch
          %154 = sbr.rel (%p152) target = $region20
        $region19: #{tpu_custom_call.1} parent=11 // pred_region
          _
        $region20: #{tpu_custom_call.1} parent=11 // pred_fallthru
          _
      $region12: #{tpu_custom_call.1} parent=5 // pred_fallthru
        _
      %p155 = scmp.lt.s32.totalorder %s16, 4
      // Predicated region
      $region21: #{tpu_custom_call.1} parent=5 // pred_check
        %p156 = pneg %p155
      $region22: #{tpu_custom_call.1} parent=5 // pred_check_branch
        %158 = sbr.rel (%p156) target = $region24
      $region23: #{tpu_custom_call.1} parent=5 // pred_region
        // Predicated region
        $region25: #{tpu_custom_call.1} parent=23 // pred_check
          %p159 = pneg %p48
        $region26: #{tpu_custom_call.1} parent=23 // pred_check_branch
          %161 = sbr.rel (%p159) target = $region28
        $region27: #{tpu_custom_call.1} parent=23 // pred_region
          %s162 = sand.u32 %s38, 1
          %s163 = scalar_lea.sflag [#allocation3], %s162
          %s164 = sand.u32 %s38, 1
          %s165 = smul.addr %s164, 16
          %s166 = scalar_lea.vmem [#allocation2], %s165
          %s168 = ssub.s32 256, 256
          %169 = vsyncadd %s163, %s168
          %s170 = smul.addr %s23, 2
          %s171 = smul.addr %s170, 128
          %s172 = scalar_lea.hbm %s0, %s171
          %s173 = sshll.u32 %s166, 4
          %s174 = int_to_ptr.vmem [resolvable:$true] %s173
          %179 = dma.hbm_to_vmem [thread:$0]  %s172, 256, %s174, %s163, 128, 128, 8
        $region28: #{tpu_custom_call.1} parent=23 // pred_fallthru
          _
      $region24: #{tpu_custom_call.1} parent=5 // pred_fallthru
        _
      %p180 = scmp.le.s32.totalorder 1, %s16
      %p181 = scmp.lt.s32.totalorder %s16, 5
      %p182 = pnand %p180, %p181
      %p183 = pneg %p182
      // Predicated region
      $region29: #{tpu_custom_call.1} parent=5 // pred_check
        _
      $region30: #{tpu_custom_call.1} parent=5 // pred_check_branch
        %185 = sbr.rel (%p182) target = $region32
      $region31: #{tpu_custom_call.1} parent=5 // pred_region
        %s186 = ssub.s32 %s16, 1
        %s187 = sand.u32 %s41, 1
        %s188 = scalar_lea.sflag [#allocation3], %s187
        %s189 = sand.u32 %s41, 1
        %s190 = smul.addr %s189, 16
        %s191 = scalar_lea.vmem [#allocation2], %s190
        // Predicated region
        $region33: #{tpu_custom_call.1} parent=31 // pred_check
          %p192 = pneg %p54
        $region34: #{tpu_custom_call.1} parent=31 // pred_check_branch
          %194 = sbr.rel (%p192) target = $region36
        $region35: #{tpu_custom_call.1} parent=31 // pred_region
          %195 = dma.done %s188, 256
        $region36: #{tpu_custom_call.1} parent=31 // pred_fallthru
          _
        // Predicated region
        $region37: #{tpu_custom_call.1} parent=31 // pred_check
          %p196 = pneg %p75
        $region38: #{tpu_custom_call.1} parent=31 // pred_check_branch
          %198 = sbr.rel (%p196) target = $region40
        $region39: #{tpu_custom_call.1} parent=31 // pred_region
          %199 = dma.done [#allocation6], 3072
        $region40: #{tpu_custom_call.1} parent=31 // pred_fallthru
          _
        %s200 = sand.u32 %s41, 1
        %s201 = scalar_lea.sflag [#allocation3], %s200
        %s202 = sand.u32 %s41, 1
        %s203 = smul.addr %s202, 16
        %s204 = scalar_lea.vmem [#allocation2], %s203
        %p205 = pneg %p54
        %p206 = pneg %p51
        %p207 = pneg %p75
        %p208 = pneg %p72
        %p209 = pneg %p96
        %p210 = pneg %p93
        %p211 = pneg %p124
        %p212 = pneg %p121
        %s213 = sand.u32 %s111, 1
        %s214 = scalar_lea.sflag [#allocation4], %s213
        %s215 = sand.u32 %s111, 1
        %s216 = smul.addr %s215, 8
        %s217 = scalar_lea.vmem [#allocation7], %s216
        %s218 = smul.u32 %s26, 8
        %s219 = scalar_lea.vmem %s191, %s218 [#allocation2]
        %v220 = vld [vmem:[%s219] sm:$0xff]
        %s221 = ssub.s32 %s218, 1
        %p222 = scmp.gt.s32.totalorder %s221, 0
        %s223 = scalar_select %p222, %s221, 0
        %s224 = scalar_lea.vmem %s191, %s223 [#allocation2]
        %v225 = vld [vmem:[%s224] sm:$0x1]
        %p226 = scmp.gt.s32.totalorder %s218, 0
        %s227 = scalar_select %p226, 1, 0
        %s228 = scvt.s32.f32 %s227
        %v229 = vstv %s228
        %v230 = vmul.f32 %v225, %v229
        %s231 = sadd.s32 %s218, 8
        %p232 = scmp.lt.s32.totalorder %s231, 15
        %s233 = scalar_select %p232, %s231, 15
        %s234 = scalar_lea.vmem %s191, %s233 [#allocation2]
        %v235 = vld [vmem:[%s234] sm:$0x1]
        %p236 = scmp.lt.s32.totalorder %s231, 16
        %s237 = scalar_select %p236, 1, 0
        %s238 = scvt.s32.f32 %s237
        %v239 = vstv %s238
        %v240 = vmul.f32 %v235, %v239
        %v242 = vrot.slane %v220, 7
        %vm244 = vcmask 1040384
        %v245 = vsel %vm244, %v230, %v242
        %v246 = vrot.slane %v220, 1
        %v249 = vrot.slane %v240, 1
        %vm251 = vcmask 1046528
        %v252 = vsel %vm251, %v246, %v249
        %v253 = vld [vmem:[#allocation5] sm:$0xff]
        %v254 = vld [vmem:[#allocation5 + $0x8] sm:$0xff]
        %v255 = vld [vmem:[#allocation5 + $0x10] sm:$0xff]
        %v256 = vld [vmem:[#allocation5 + $0x18] sm:$0xff]
        %v257 = vld [vmem:[#allocation5 + $0x20] sm:$0xff]
        %v258 = vld [vmem:[#allocation5 + $0x28] sm:$0xff]
        %v259 = vld [vmem:[#allocation5 + $0x30] sm:$0xff]
        %v260 = vld [vmem:[#allocation5 + $0x38] sm:$0xff]
        %s261 = scalar_lea.vmem [#allocation5], 64
        %v262 = vld [vmem:[%s261] sm:$0xff]
        %v263 = vld [vmem:[%s261 + $0x8] sm:$0xff]
        %v264 = vld [vmem:[%s261 + $0x10] sm:$0xff]
        %v265 = vld [vmem:[%s261 + $0x18] sm:$0xff]
        %v266 = vld [vmem:[%s261 + $0x20] sm:$0xff]
        %v267 = vld [vmem:[%s261 + $0x28] sm:$0xff]
        %v268 = vld [vmem:[%s261 + $0x30] sm:$0xff]
        %v269 = vld [vmem:[%s261 + $0x38] sm:$0xff]
        %vm270 = vcmask 523264
        %v271 = vsel %vm270, %v220, 0
        %273 = vmatprep.subr.mxu0 0.0
        %274 = vmatpush1.msra.mxu0 %v262
        %275 = vmatprep.subr.mxu0 0.0
        %276 = vmatpush1.msra.mxu0 %v263
        %277 = vmatprep.subr.mxu0 0.0
        %278 = vmatpush1.msra.mxu0 %v264
        %279 = vmatprep.subr.mxu0 0.0
        %280 = vmatpush1.msra.mxu0 %v265
        %281 = vmatprep.subr.mxu0 0.0
        %282 = vmatpush1.msra.mxu0 %v266
        %283 = vmatprep.subr.mxu0 0.0
        %284 = vmatpush1.msra.mxu0 %v267
        %285 = vmatprep.subr.mxu0 0.0
        %286 = vmatpush1.msra.mxu0 %v268
        %287 = vmatprep.subr.mxu0 0.0
        %288 = vmatpush1.msra.mxu0 %v269
        %289 = vmatprep.subr.mxu0 0.0
        %290 = vmatpush1.msra.mxu0 0.0
        %291 = vmatprep.subr.mxu0 0.0
        %292 = vmatpush1.msra.mxu0 0.0
        %293 = vmatprep.subr.mxu0 0.0
        %294 = vmatpush1.msra.mxu0 0.0
        %295 = vmatprep.subr.mxu0 0.0
        %296 = vmatpush1.msra.mxu0 0.0
        %297 = vmatprep.subr.mxu0 0.0
        %298 = vmatpush1.msra.mxu0 0.0
        %299 = vmatprep.subr.mxu0 0.0
        %300 = vmatpush1.msra.mxu0 0.0
        %301 = vmatprep.subr.mxu0 0.0
        %302 = vmatpush1.msra.mxu0 0.0
        %303 = vmatprep.subr.mxu0 0.0
        %304 = vmatpush1.msra.mxu0 0.0
        %305 = vmatprep.subr.mxu0 0.0
        %306 = vmatpush1.msra.mxu0 0.0
        %307 = vmatprep.subr.mxu0 0.0
        %308 = vmatpush1.msra.mxu0 0.0
        %309 = vmatprep.subr.mxu0 0.0
        %310 = vmatpush1.msra.mxu0 0.0
        %311 = vmatprep.subr.mxu0 0.0
        %312 = vmatpush1.msra.mxu0 0.0
        %313 = vmatprep.subr.mxu0 0.0
        %314 = vmatpush1.msra.mxu0 0.0
        %315 = vmatprep.subr.mxu0 0.0
        %316 = vmatpush1.msra.mxu0 0.0
        %317 = vmatprep.subr.mxu0 0.0
        %318 = vmatpush1.msra.mxu0 0.0
        %319 = vmatprep.subr.mxu0 0.0
        %320 = vmatpush1.msra.mxu0 0.0
        %321 = vmatprep.subr.mxu0 0.0
        %322 = vmatpush1.msra.mxu0 0.0
        %323 = vmatprep.subr.mxu0 0.0
        %324 = vmatpush1.msra.mxu0 0.0
        %325 = vmatprep.subr.mxu0 0.0
        %326 = vmatpush1.msra.mxu0 0.0
        %327 = vmatprep.subr.mxu0 0.0
        %328 = vmatpush1.msra.mxu0 0.0
        %329 = vmatprep.subr.mxu0 0.0
        %330 = vmatpush1.msra.mxu0 0.0
        %331 = vmatprep.subr.mxu0 0.0
        %332 = vmatpush1.msra.mxu0 0.0
        %333 = vmatprep.subr.mxu0 0.0
        %334 = vmatpush1.msra.mxu0 0.0
        %335 = vmatprep.subr.mxu0 0.0
        %336 = vmatpush1.msra.mxu0 0.0
        %337 = vmatprep.mubr.f32.mxu0 0.0
        %338 = vmatmul.mubr.f32.gmra.mrb[0].mxu0 %v271
        %v339 = vpop.f32.mrb[0].mxu0
        %v340 = vadd.f32 0.0, %v339
        %v341 = vpop.f32.mrb[0].mxu0
        %342 = vdwg.mxu0
        %v344 = vsel %vm270, %v245, 0
        %346 = vmatprep.subr.mxu0 0.0
        %347 = vmatpush1.msra.mxu0 %v253
        %348 = vmatprep.subr.mxu0 0.0
        %349 = vmatpush1.msra.mxu0 %v254
        %350 = vmatprep.subr.mxu0 0.0
        %351 = vmatpush1.msra.mxu0 %v255
        %352 = vmatprep.subr.mxu0 0.0
        %353 = vmatpush1.msra.mxu0 %v256
        %354 = vmatprep.subr.mxu0 0.0
        %355 = vmatpush1.msra.mxu0 %v257
        %356 = vmatprep.subr.mxu0 0.0
        %357 = vmatpush1.msra.mxu0 %v258
        %358 = vmatprep.subr.mxu0 0.0
        %359 = vmatpush1.msra.mxu0 %v259
        %360 = vmatprep.subr.mxu0 0.0
        %361 = vmatpush1.msra.mxu0 %v260
        %362 = vmatprep.subr.mxu0 0.0
        %363 = vmatpush1.msra.mxu0 0.0
        %364 = vmatprep.subr.mxu0 0.0
        %365 = vmatpush1.msra.mxu0 0.0
        %366 = vmatprep.subr.mxu0 0.0
        %367 = vmatpush1.msra.mxu0 0.0
        %368 = vmatprep.subr.mxu0 0.0
        %369 = vmatpush1.msra.mxu0 0.0
        %370 = vmatprep.subr.mxu0 0.0
        %371 = vmatpush1.msra.mxu0 0.0
        %372 = vmatprep.subr.mxu0 0.0
        %373 = vmatpush1.msra.mxu0 0.0
        %374 = vmatprep.subr.mxu0 0.0
        %375 = vmatpush1.msra.mxu0 0.0
        %376 = vmatprep.subr.mxu0 0.0
        %377 = vmatpush1.msra.mxu0 0.0
        %378 = vmatprep.subr.mxu0 0.0
        %379 = vmatpush1.msra.mxu0 0.0
        %380 = vmatprep.subr.mxu0 0.0
        %381 = vmatpush1.msra.mxu0 0.0
        %382 = vmatprep.subr.mxu0 0.0
        %383 = vmatpush1.msra.mxu0 0.0
        %384 = vmatprep.subr.mxu0 0.0
        %385 = vmatpush1.msra.mxu0 0.0
        %386 = vmatprep.subr.mxu0 0.0
        %387 = vmatpush1.msra.mxu0 0.0
        %388 = vmatprep.subr.mxu0 0.0
        %389 = vmatpush1.msra.mxu0 0.0
        %390 = vmatprep.subr.mxu0 0.0
        %391 = vmatpush1.msra.mxu0 0.0
        %392 = vmatprep.subr.mxu0 0.0
        %393 = vmatpush1.msra.mxu0 0.0
        %394 = vmatprep.subr.mxu0 0.0
        %395 = vmatpush1.msra.mxu0 0.0
        %396 = vmatprep.subr.mxu0 0.0
        %397 = vmatpush1.msra.mxu0 0.0
        %398 = vmatprep.subr.mxu0 0.0
        %399 = vmatpush1.msra.mxu0 0.0
        %400 = vmatprep.subr.mxu0 0.0
        %401 = vmatpush1.msra.mxu0 0.0
        %402 = vmatprep.subr.mxu0 0.0
        %403 = vmatpush1.msra.mxu0 0.0
        %404 = vmatprep.subr.mxu0 0.0
        %405 = vmatpush1.msra.mxu0 0.0
        %406 = vmatprep.subr.mxu0 0.0
        %407 = vmatpush1.msra.mxu0 0.0
        %408 = vmatprep.subr.mxu0 0.0
        %409 = vmatpush1.msra.mxu0 0.0
        %410 = vmatprep.mubr.f32.mxu0 0.0
        %411 = vmatmul.mubr.f32.gmra.mrb[0].mxu0 %v344
        %v412 = vpop.f32.mrb[0].mxu0
        %v413 = vadd.f32 %v340, %v412
        %v414 = vpop.f32.mrb[0].mxu0
        %415 = vdwg.mxu0
        %s416 = scalar_lea.vmem [#allocation5], 128
        %v417 = vld [vmem:[%s416] sm:$0xff]
        %v418 = vld [vmem:[%s416 + $0x8] sm:$0xff]
        %v419 = vld [vmem:[%s416 + $0x10] sm:$0xff]
        %v420 = vld [vmem:[%s416 + $0x18] sm:$0xff]
        %v421 = vld [vmem:[%s416 + $0x20] sm:$0xff]
        %v422 = vld [vmem:[%s416 + $0x28] sm:$0xff]
        %v423 = vld [vmem:[%s416 + $0x30] sm:$0xff]
        %v424 = vld [vmem:[%s416 + $0x38] sm:$0xff]
        %v426 = vsel %vm270, %v252, 0
        %428 = vmatprep.subr.mxu0 0.0
        %429 = vmatpush1.msra.mxu0 %v417
        %430 = vmatprep.subr.mxu0 0.0
        %431 = vmatpush1.msra.mxu0 %v418
        %432 = vmatprep.subr.mxu0 0.0
        %433 = vmatpush1.msra.mxu0 %v419
        %434 = vmatprep.subr.mxu0 0.0
        %435 = vmatpush1.msra.mxu0 %v420
        %436 = vmatprep.subr.mxu0 0.0
        %437 = vmatpush1.msra.mxu0 %v421
        %438 = vmatprep.subr.mxu0 0.0
        %439 = vmatpush1.msra.mxu0 %v422
        %440 = vmatprep.subr.mxu0 0.0
        %441 = vmatpush1.msra.mxu0 %v423
        %442 = vmatprep.subr.mxu0 0.0
        %443 = vmatpush1.msra.mxu0 %v424
        %444 = vmatprep.subr.mxu0 0.0
        %445 = vmatpush1.msra.mxu0 0.0
        %446 = vmatprep.subr.mxu0 0.0
        %447 = vmatpush1.msra.mxu0 0.0
        %448 = vmatprep.subr.mxu0 0.0
        %449 = vmatpush1.msra.mxu0 0.0
        %450 = vmatprep.subr.mxu0 0.0
        %451 = vmatpush1.msra.mxu0 0.0
        %452 = vmatprep.subr.mxu0 0.0
        %453 = vmatpush1.msra.mxu0 0.0
        %454 = vmatprep.subr.mxu0 0.0
        %455 = vmatpush1.msra.mxu0 0.0
        %456 = vmatprep.subr.mxu0 0.0
        %457 = vmatpush1.msra.mxu0 0.0
        %458 = vmatprep.subr.mxu0 0.0
        %459 = vmatpush1.msra.mxu0 0.0
        %460 = vmatprep.subr.mxu0 0.0
        %461 = vmatpush1.msra.mxu0 0.0
        %462 = vmatprep.subr.mxu0 0.0
        %463 = vmatpush1.msra.mxu0 0.0
        %464 = vmatprep.subr.mxu0 0.0
        %465 = vmatpush1.msra.mxu0 0.0
        %466 = vmatprep.subr.mxu0 0.0
        %467 = vmatpush1.msra.mxu0 0.0
        %468 = vmatprep.subr.mxu0 0.0
        %469 = vmatpush1.msra.mxu0 0.0
        %470 = vmatprep.subr.mxu0 0.0
        %471 = vmatpush1.msra.mxu0 0.0
        %472 = vmatprep.subr.mxu0 0.0
        %473 = vmatpush1.msra.mxu0 0.0
        %474 = vmatprep.subr.mxu0 0.0
        %475 = vmatpush1.msra.mxu0 0.0
        %476 = vmatprep.subr.mxu0 0.0
        %477 = vmatpush1.msra.mxu0 0.0
        %478 = vmatprep.subr.mxu0 0.0
        %479 = vmatpush1.msra.mxu0 0.0
        %480 = vmatprep.subr.mxu0 0.0
        %481 = vmatpush1.msra.mxu0 0.0
        %482 = vmatprep.subr.mxu0 0.0
        %483 = vmatpush1.msra.mxu0 0.0
        %484 = vmatprep.subr.mxu0 0.0
        %485 = vmatpush1.msra.mxu0 0.0
        %486 = vmatprep.subr.mxu0 0.0
        %487 = vmatpush1.msra.mxu0 0.0
        %488 = vmatprep.subr.mxu0 0.0
        %489 = vmatpush1.msra.mxu0 0.0
        %490 = vmatprep.subr.mxu0 0.0
        %491 = vmatpush1.msra.mxu0 0.0
        %492 = vmatprep.mubr.f32.mxu0 0.0
        %493 = vmatmul.mubr.f32.gmra.mrb[0].mxu0 %v426
        %v494 = vpop.f32.mrb[0].mxu0
        %v495 = vadd.f32 0.0, %v494
        %v496 = vpop.f32.mrb[0].mxu0
        %497 = vdwg.mxu0
        %v498 = vadd.f32 %v413, %v495
        %v499 = vld [vmem:[%s2] sm:$0x1]
        %v501 = vlaneseq
        %v502 = vshrl.u32 %v501, 7
        %v503 = vsub.s32 0, %v502
        %v504 = vrot.slane %v499, %v503
        %v506 = vadd.f32 %v498, %v504
        %v507 = vmax.f32 %v506, 0.0
        %509 = vrot.lane.b32.xlu0 %v507, 124
        %v510 = vpop.permute.xlu0 %509
        %512 = vrot.lane.b32.xlu0 %v507, 120
        %v513 = vpop.permute.xlu0 %512
        %515 = vrot.lane.b32.xlu0 %v507, 116
        %v516 = vpop.permute.xlu0 %515
        %518 = vrot.lane.b32.xlu0 %v507, 112
        %v519 = vpop.permute.xlu0 %518
        %521 = vrot.lane.b32.xlu0 %v507, 108
        %v522 = vpop.permute.xlu0 %521
        %524 = vrot.lane.b32.xlu0 %v507, 104
        %v525 = vpop.permute.xlu0 %524
        %527 = vrot.lane.b32.xlu0 %v507, 100
        %v528 = vpop.permute.xlu0 %527
        %530 = vrot.lane.b32.xlu0 %v507, 96
        %v531 = vpop.permute.xlu0 %530
        %533 = vrot.lane.b32.xlu0 %v507, 92
        %v534 = vpop.permute.xlu0 %533
        %536 = vrot.lane.b32.xlu0 %v507, 88
        %v537 = vpop.permute.xlu0 %536
        %539 = vrot.lane.b32.xlu0 %v507, 84
        %v540 = vpop.permute.xlu0 %539
        %542 = vrot.lane.b32.xlu0 %v507, 80
        %v543 = vpop.permute.xlu0 %542
        %545 = vrot.lane.b32.xlu0 %v507, 76
        %v546 = vpop.permute.xlu0 %545
        %548 = vrot.lane.b32.xlu0 %v507, 72
        %v549 = vpop.permute.xlu0 %548
        %551 = vrot.lane.b32.xlu0 %v507, 68
        %v552 = vpop.permute.xlu0 %551
        %v554 = vcombine.low %v507, %v513
        %v555 = vcombine.high %v507, %v513
        %v557 = vunpack.c.l.s4 1983009808
        %v558 = vunpack.c.0.s8 %v557
        %v559 = vlaneseq
        %v560 = vshrl.u32 %v559, 7
        %v561 = vsub.s32 %v558, %v560
        %v562 = vrot.slane %v554, %v561
        %v564 = vunpack.c.l.s4 1983009808
        %v565 = vunpack.c.0.s8 %v564
        %v566 = vlaneseq
        %v567 = vshrl.u32 %v566, 7
        %v568 = vsub.s32 %v565, %v567
        %v569 = vrot.slane %v555, %v568
        %v570 = vcombine.low %v510, %v516
        %v571 = vcombine.high %v510, %v516
        %v573 = vunpack.c.l.s4 1983009808
        %v574 = vunpack.c.0.s8 %v573
        %v575 = vlaneseq
        %v576 = vshrl.u32 %v575, 7
        %v577 = vsub.s32 %v574, %v576
        %v578 = vrot.slane %v570, %v577
        %v580 = vunpack.c.l.s4 1983009808
        %v581 = vunpack.c.0.s8 %v580
        %v582 = vlaneseq
        %v583 = vshrl.u32 %v582, 7
        %v584 = vsub.s32 %v581, %v583
        %v585 = vrot.slane %v571, %v584
        %v586 = vcombine.low %v519, %v525
        %v587 = vcombine.high %v519, %v525
        %v589 = vunpack.c.l.s4 1983009808
        %v590 = vunpack.c.0.s8 %v589
        %v591 = vlaneseq
        %v592 = vshrl.u32 %v591, 7
        %v593 = vsub.s32 %v590, %v592
        %v594 = vrot.slane %v586, %v593
        %v596 = vunpack.c.l.s4 1983009808
        %v597 = vunpack.c.0.s8 %v596
        %v598 = vlaneseq
        %v599 = vshrl.u32 %v598, 7
        %v600 = vsub.s32 %v597, %v599
        %v601 = vrot.slane %v587, %v600
        %v602 = vcombine.low %v522, %v528
        %v603 = vcombine.high %v522, %v528
        %v605 = vunpack.c.l.s4 1983009808
        %v606 = vunpack.c.0.s8 %v605
        %v607 = vlaneseq
        %v608 = vshrl.u32 %v607, 7
        %v609 = vsub.s32 %v606, %v608
        %v610 = vrot.slane %v602, %v609
        %v612 = vunpack.c.l.s4 1983009808
        %v613 = vunpack.c.0.s8 %v612
        %v614 = vlaneseq
        %v615 = vshrl.u32 %v614, 7
        %v616 = vsub.s32 %v613, %v615
        %v617 = vrot.slane %v603, %v616
        %v618 = vcombine.low %v562, %v578
        %v619 = vcombine.high %v562, %v578
        %v621 = vunpack.c.l.s4 1934713408
        %v622 = vunpack.c.0.s8 %v621
        %v623 = vlaneseq
        %v624 = vshrl.u32 %v623, 7
        %v625 = vsub.s32 %v622, %v624
        %v626 = vrot.slane %v618, %v625
        %v628 = vunpack.c.l.s4 1934713408
        %v629 = vunpack.c.0.s8 %v628
        %v630 = vlaneseq
        %v631 = vshrl.u32 %v630, 7
        %v632 = vsub.s32 %v629, %v631
        %v633 = vrot.slane %v619, %v632
        %v634 = vcombine.low %v569, %v585
        %v635 = vcombine.high %v569, %v585
        %v637 = vunpack.c.l.s4 1934713408
        %v638 = vunpack.c.0.s8 %v637
        %v639 = vlaneseq
        %v640 = vshrl.u32 %v639, 7
        %v641 = vsub.s32 %v638, %v640
        %v642 = vrot.slane %v634, %v641
        %v644 = vunpack.c.l.s4 1934713408
        %v645 = vunpack.c.0.s8 %v644
        %v646 = vlaneseq
        %v647 = vshrl.u32 %v646, 7
        %v648 = vsub.s32 %v645, %v647
        %v649 = vrot.slane %v635, %v648
        %v650 = vcombine.low %v594, %v610
        %v651 = vcombine.high %v594, %v610
        %v653 = vunpack.c.l.s4 1934713408
        %v654 = vunpack.c.0.s8 %v653
        %v655 = vlaneseq
        %v656 = vshrl.u32 %v655, 7
        %v657 = vsub.s32 %v654, %v656
        %v658 = vrot.slane %v650, %v657
        %v660 = vunpack.c.l.s4 1934713408
        %v661 = vunpack.c.0.s8 %v660
        %v662 = vlaneseq
        %v663 = vshrl.u32 %v662, 7
        %v664 = vsub.s32 %v661, %v663
        %v665 = vrot.slane %v651, %v664
        %v666 = vcombine.low %v601, %v617
        %v667 = vcombine.high %v601, %v617
        %v669 = vunpack.c.l.s4 1934713408
        %v670 = vunpack.c.0.s8 %v669
        %v671 = vlaneseq
        %v672 = vshrl.u32 %v671, 7
        %v673 = vsub.s32 %v670, %v672
        %v674 = vrot.slane %v666, %v673
        %v676 = vunpack.c.l.s4 1934713408
        %v677 = vunpack.c.0.s8 %v676
        %v678 = vlaneseq
        %v679 = vshrl.u32 %v678, 7
        %v680 = vsub.s32 %v677, %v679
        %v681 = vrot.slane %v667, %v680
        %v682 = vcombine.low %v626, %v658
        %v683 = vcombine.high %v626, %v658
        %v684 = vcombine.low %v633, %v665
        %v685 = vcombine.high %v633, %v665
        %v686 = vcombine.low %v642, %v674
        %v687 = vcombine.high %v642, %v674
        %v688 = vcombine.low %v649, %v681
        %v689 = vcombine.high %v649, %v681
        %v690 = vcombine.low %v531, %v537
        %v691 = vcombine.high %v531, %v537
        %v693 = vunpack.c.l.s4 1983009808
        %v694 = vunpack.c.0.s8 %v693
        %v695 = vlaneseq
        %v696 = vshrl.u32 %v695, 7
        %v697 = vsub.s32 %v694, %v696
        %v698 = vrot.slane %v690, %v697
        %v700 = vunpack.c.l.s4 1983009808
        %v701 = vunpack.c.0.s8 %v700
        %v702 = vlaneseq
        %v703 = vshrl.u32 %v702, 7
        %v704 = vsub.s32 %v701, %v703
        %v705 = vrot.slane %v691, %v704
        %v706 = vcombine.low %v534, %v540
        %v707 = vcombine.high %v534, %v540
        %v709 = vunpack.c.l.s4 1983009808
        %v710 = vunpack.c.0.s8 %v709
        %v711 = vlaneseq
        %v712 = vshrl.u32 %v711, 7
        %v713 = vsub.s32 %v710, %v712
        %v714 = vrot.slane %v706, %v713
        %v716 = vunpack.c.l.s4 1983009808
        %v717 = vunpack.c.0.s8 %v716
        %v718 = vlaneseq
        %v719 = vshrl.u32 %v718, 7
        %v720 = vsub.s32 %v717, %v719
        %v721 = vrot.slane %v707, %v720
        %v722 = vcombine.low %v543, %v549
        %v723 = vcombine.high %v543, %v549
        %v725 = vunpack.c.l.s4 1983009808
        %v726 = vunpack.c.0.s8 %v725
        %v727 = vlaneseq
        %v728 = vshrl.u32 %v727, 7
        %v729 = vsub.s32 %v726, %v728
        %v730 = vrot.slane %v722, %v729
        %v732 = vunpack.c.l.s4 1983009808
        %v733 = vunpack.c.0.s8 %v732
        %v734 = vlaneseq
        %v735 = vshrl.u32 %v734, 7
        %v736 = vsub.s32 %v733, %v735
        %v737 = vrot.slane %v723, %v736
        %v738 = vcombine.low %v546, %v552
        %v739 = vcombine.high %v546, %v552
        %v741 = vunpack.c.l.s4 1983009808
        %v742 = vunpack.c.0.s8 %v741
        %v743 = vlaneseq
        %v744 = vshrl.u32 %v743, 7
        %v745 = vsub.s32 %v742, %v744
        %v746 = vrot.slane %v738, %v745
        %v748 = vunpack.c.l.s4 1983009808
        %v749 = vunpack.c.0.s8 %v748
        %v750 = vlaneseq
        %v751 = vshrl.u32 %v750, 7
        %v752 = vsub.s32 %v749, %v751
        %v753 = vrot.slane %v739, %v752
        %v754 = vcombine.low %v698, %v714
        %v755 = vcombine.high %v698, %v714
        %v757 = vunpack.c.l.s4 1934713408
        %v758 = vunpack.c.0.s8 %v757
        %v759 = vlaneseq
        %v760 = vshrl.u32 %v759, 7
        %v761 = vsub.s32 %v758, %v760
        %v762 = vrot.slane %v754, %v761
        %v764 = vunpack.c.l.s4 1934713408
        %v765 = vunpack.c.0.s8 %v764
        %v766 = vlaneseq
        %v767 = vshrl.u32 %v766, 7
        %v768 = vsub.s32 %v765, %v767
        %v769 = vrot.slane %v755, %v768
        %v770 = vcombine.low %v705, %v721
        %v771 = vcombine.high %v705, %v721
        %v773 = vunpack.c.l.s4 1934713408
        %v774 = vunpack.c.0.s8 %v773
        %v775 = vlaneseq
        %v776 = vshrl.u32 %v775, 7
        %v777 = vsub.s32 %v774, %v776
        %v778 = vrot.slane %v770, %v777
        %v780 = vunpack.c.l.s4 1934713408
        %v781 = vunpack.c.0.s8 %v780
        %v782 = vlaneseq
        %v783 = vshrl.u32 %v782, 7
        %v784 = vsub.s32 %v781, %v783
        %v785 = vrot.slane %v771, %v784
        %v786 = vcombine.low %v730, %v746
        %v787 = vcombine.high %v730, %v746
        %v789 = vunpack.c.l.s4 1934713408
        %v790 = vunpack.c.0.s8 %v789
        %v791 = vlaneseq
        %v792 = vshrl.u32 %v791, 7
        %v793 = vsub.s32 %v790, %v792
        %v794 = vrot.slane %v786, %v793
        %v796 = vunpack.c.l.s4 1934713408
        %v797 = vunpack.c.0.s8 %v796
        %v798 = vlaneseq
        %v799 = vshrl.u32 %v798, 7
        %v800 = vsub.s32 %v797, %v799
        %v801 = vrot.slane %v787, %v800
        %v802 = vcombine.low %v737, %v753
        %v803 = vcombine.high %v737, %v753
        %v805 = vunpack.c.l.s4 1934713408
        %v806 = vunpack.c.0.s8 %v805
        %v807 = vlaneseq
        %v808 = vshrl.u32 %v807, 7
        %v809 = vsub.s32 %v806, %v808
        %v810 = vrot.slane %v802, %v809
        %v812 = vunpack.c.l.s4 1934713408
        %v813 = vunpack.c.0.s8 %v812
        %v814 = vlaneseq
        %v815 = vshrl.u32 %v814, 7
        %v816 = vsub.s32 %v813, %v815
        %v817 = vrot.slane %v803, %v816
        %v818 = vcombine.low %v762, %v794
        %v819 = vcombine.high %v762, %v794
        %v820 = vcombine.low %v769, %v801
        %v821 = vcombine.high %v769, %v801
        %v822 = vcombine.low %v778, %v810
        %v823 = vcombine.high %v778, %v810
        %v824 = vcombine.low %v785, %v817
        %v825 = vcombine.high %v785, %v817
        %826 = vrot.lane.b32.xlu0 %v220, 124
        %v827 = vpop.permute.xlu0 %826
        %829 = vrot.lane.b32.xlu0 %v220, 120
        %v830 = vpop.permute.xlu0 %829
        %832 = vrot.lane.b32.xlu0 %v220, 116
        %v833 = vpop.permute.xlu0 %832
        %835 = vrot.lane.b32.xlu0 %v220, 112
        %v836 = vpop.permute.xlu0 %835
        %838 = vrot.lane.b32.xlu0 %v220, 108
        %v839 = vpop.permute.xlu0 %838
        %841 = vrot.lane.b32.xlu0 %v220, 104
        %v842 = vpop.permute.xlu0 %841
        %844 = vrot.lane.b32.xlu0 %v220, 100
        %v845 = vpop.permute.xlu0 %844
        %847 = vrot.lane.b32.xlu0 %v220, 96
        %v848 = vpop.permute.xlu0 %847
        %850 = vrot.lane.b32.xlu0 %v220, 92
        %v851 = vpop.permute.xlu0 %850
        %853 = vrot.lane.b32.xlu0 %v220, 88
        %v854 = vpop.permute.xlu0 %853
        %856 = vrot.lane.b32.xlu0 %v220, 84
        %v857 = vpop.permute.xlu0 %856
        %859 = vrot.lane.b32.xlu0 %v220, 80
        %v860 = vpop.permute.xlu0 %859
        %862 = vrot.lane.b32.xlu0 %v220, 76
        %v863 = vpop.permute.xlu0 %862
        %865 = vrot.lane.b32.xlu0 %v220, 72
        %v866 = vpop.permute.xlu0 %865
        %868 = vrot.lane.b32.xlu0 %v220, 68
        %v869 = vpop.permute.xlu0 %868
        %v871 = vcombine.low %v220, %v830
        %v872 = vcombine.high %v220, %v830
        %v874 = vunpack.c.l.s4 1983009808
        %v875 = vunpack.c.0.s8 %v874
        %v876 = vlaneseq
        %v877 = vshrl.u32 %v876, 7
        %v878 = vsub.s32 %v875, %v877
        %v879 = vrot.slane %v871, %v878
        %v881 = vunpack.c.l.s4 1983009808
        %v882 = vunpack.c.0.s8 %v881
        %v883 = vlaneseq
        %v884 = vshrl.u32 %v883, 7
        %v885 = vsub.s32 %v882, %v884
        %v886 = vrot.slane %v872, %v885
        %v887 = vcombine.low %v827, %v833
        %v888 = vcombine.high %v827, %v833
        %v890 = vunpack.c.l.s4 1983009808
        %v891 = vunpack.c.0.s8 %v890
        %v892 = vlaneseq
        %v893 = vshrl.u32 %v892, 7
        %v894 = vsub.s32 %v891, %v893
        %v895 = vrot.slane %v887, %v894
        %v897 = vunpack.c.l.s4 1983009808
        %v898 = vunpack.c.0.s8 %v897
        %v899 = vlaneseq
        %v900 = vshrl.u32 %v899, 7
        %v901 = vsub.s32 %v898, %v900
        %v902 = vrot.slane %v888, %v901
        %v903 = vcombine.low %v836, %v842
        %v904 = vcombine.high %v836, %v842
        %v906 = vunpack.c.l.s4 1983009808
        %v907 = vunpack.c.0.s8 %v906
        %v908 = vlaneseq
        %v909 = vshrl.u32 %v908, 7
        %v910 = vsub.s32 %v907, %v909
        %v911 = vrot.slane %v903, %v910
        %v913 = vunpack.c.l.s4 1983009808
        %v914 = vunpack.c.0.s8 %v913
        %v915 = vlaneseq
        %v916 = vshrl.u32 %v915, 7
        %v917 = vsub.s32 %v914, %v916
        %v918 = vrot.slane %v904, %v917
        %v919 = vcombine.low %v839, %v845
        %v920 = vcombine.high %v839, %v845
        %v922 = vunpack.c.l.s4 1983009808
        %v923 = vunpack.c.0.s8 %v922
        %v924 = vlaneseq
        %v925 = vshrl.u32 %v924, 7
        %v926 = vsub.s32 %v923, %v925
        %v927 = vrot.slane %v919, %v926
        %v929 = vunpack.c.l.s4 1983009808
        %v930 = vunpack.c.0.s8 %v929
        %v931 = vlaneseq
        %v932 = vshrl.u32 %v931, 7
        %v933 = vsub.s32 %v930, %v932
        %v934 = vrot.slane %v920, %v933
        %v935 = vcombine.low %v879, %v895
        %v936 = vcombine.high %v879, %v895
        %v938 = vunpack.c.l.s4 1934713408
        %v939 = vunpack.c.0.s8 %v938
        %v940 = vlaneseq
        %v941 = vshrl.u32 %v940, 7
        %v942 = vsub.s32 %v939, %v941
        %v943 = vrot.slane %v935, %v942
        %v945 = vunpack.c.l.s4 1934713408
        %v946 = vunpack.c.0.s8 %v945
        %v947 = vlaneseq
        %v948 = vshrl.u32 %v947, 7
        %v949 = vsub.s32 %v946, %v948
        %v950 = vrot.slane %v936, %v949
        %v951 = vcombine.low %v886, %v902
        %v952 = vcombine.high %v886, %v902
        %v954 = vunpack.c.l.s4 1934713408
        %v955 = vunpack.c.0.s8 %v954
        %v956 = vlaneseq
        %v957 = vshrl.u32 %v956, 7
        %v958 = vsub.s32 %v955, %v957
        %v959 = vrot.slane %v951, %v958
        %v961 = vunpack.c.l.s4 1934713408
        %v962 = vunpack.c.0.s8 %v961
        %v963 = vlaneseq
        %v964 = vshrl.u32 %v963, 7
        %v965 = vsub.s32 %v962, %v964
        %v966 = vrot.slane %v952, %v965
        %v967 = vcombine.low %v911, %v927
        %v968 = vcombine.high %v911, %v927
        %v970 = vunpack.c.l.s4 1934713408
        %v971 = vunpack.c.0.s8 %v970
        %v972 = vlaneseq
        %v973 = vshrl.u32 %v972, 7
        %v974 = vsub.s32 %v971, %v973
        %v975 = vrot.slane %v967, %v974
        %v977 = vunpack.c.l.s4 1934713408
        %v978 = vunpack.c.0.s8 %v977
        %v979 = vlaneseq
        %v980 = vshrl.u32 %v979, 7
        %v981 = vsub.s32 %v978, %v980
        %v982 = vrot.slane %v968, %v981
        %v983 = vcombine.low %v918, %v934
        %v984 = vcombine.high %v918, %v934
        %v986 = vunpack.c.l.s4 1934713408
        %v987 = vunpack.c.0.s8 %v986
        %v988 = vlaneseq
        %v989 = vshrl.u32 %v988, 7
        %v990 = vsub.s32 %v987, %v989
        %v991 = vrot.slane %v983, %v990
        %v993 = vunpack.c.l.s4 1934713408
        %v994 = vunpack.c.0.s8 %v993
        %v995 = vlaneseq
        %v996 = vshrl.u32 %v995, 7
        %v997 = vsub.s32 %v994, %v996
        %v998 = vrot.slane %v984, %v997
        %v999 = vcombine.low %v943, %v975
        %v1000 = vcombine.high %v943, %v975
        %v1001 = vcombine.low %v950, %v982
        %v1002 = vcombine.high %v950, %v982
        %v1003 = vcombine.low %v959, %v991
        %v1004 = vcombine.high %v959, %v991
        %v1005 = vcombine.low %v966, %v998
        %v1006 = vcombine.high %v966, %v998
        %v1007 = vcombine.low %v848, %v854
        %v1008 = vcombine.high %v848, %v854
        %v1010 = vunpack.c.l.s4 1983009808
        %v1011 = vunpack.c.0.s8 %v1010
        %v1012 = vlaneseq
        %v1013 = vshrl.u32 %v1012, 7
        %v1014 = vsub.s32 %v1011, %v1013
        %v1015 = vrot.slane %v1007, %v1014
        %v1017 = vunpack.c.l.s4 1983009808
        %v1018 = vunpack.c.0.s8 %v1017
        %v1019 = vlaneseq
        %v1020 = vshrl.u32 %v1019, 7
        %v1021 = vsub.s32 %v1018, %v1020
        %v1022 = vrot.slane %v1008, %v1021
        %v1023 = vcombine.low %v851, %v857
        %v1024 = vcombine.high %v851, %v857
        %v1026 = vunpack.c.l.s4 1983009808
        %v1027 = vunpack.c.0.s8 %v1026
        %v1028 = vlaneseq
        %v1029 = vshrl.u32 %v1028, 7
        %v1030 = vsub.s32 %v1027, %v1029
        %v1031 = vrot.slane %v1023, %v1030
        %v1033 = vunpack.c.l.s4 1983009808
        %v1034 = vunpack.c.0.s8 %v1033
        %v1035 = vlaneseq
        %v1036 = vshrl.u32 %v1035, 7
        %v1037 = vsub.s32 %v1034, %v1036
        %v1038 = vrot.slane %v1024, %v1037
        %v1039 = vcombine.low %v860, %v866
        %v1040 = vcombine.high %v860, %v866
        %v1042 = vunpack.c.l.s4 1983009808
        %v1043 = vunpack.c.0.s8 %v1042
        %v1044 = vlaneseq
        %v1045 = vshrl.u32 %v1044, 7
        %v1046 = vsub.s32 %v1043, %v1045
        %v1047 = vrot.slane %v1039, %v1046
        %v1049 = vunpack.c.l.s4 1983009808
        %v1050 = vunpack.c.0.s8 %v1049
        %v1051 = vlaneseq
        %v1052 = vshrl.u32 %v1051, 7
        %v1053 = vsub.s32 %v1050, %v1052
        %v1054 = vrot.slane %v1040, %v1053
        %v1055 = vcombine.low %v863, %v869
        %v1056 = vcombine.high %v863, %v869
        %v1058 = vunpack.c.l.s4 1983009808
        %v1059 = vunpack.c.0.s8 %v1058
        %v1060 = vlaneseq
        %v1061 = vshrl.u32 %v1060, 7
        %v1062 = vsub.s32 %v1059, %v1061
        %v1063 = vrot.slane %v1055, %v1062
        %v1065 = vunpack.c.l.s4 1983009808
        %v1066 = vunpack.c.0.s8 %v1065
        %v1067 = vlaneseq
        %v1068 = vshrl.u32 %v1067, 7
        %v1069 = vsub.s32 %v1066, %v1068
        %v1070 = vrot.slane %v1056, %v1069
        %v1071 = vcombine.low %v1015, %v1031
        %v1072 = vcombine.high %v1015, %v1031
        %v1074 = vunpack.c.l.s4 1934713408
        %v1075 = vunpack.c.0.s8 %v1074
        %v1076 = vlaneseq
        %v1077 = vshrl.u32 %v1076, 7
        %v1078 = vsub.s32 %v1075, %v1077
        %v1079 = vrot.slane %v1071, %v1078
        %v1081 = vunpack.c.l.s4 1934713408
        %v1082 = vunpack.c.0.s8 %v1081
        %v1083 = vlaneseq
        %v1084 = vshrl.u32 %v1083, 7
        %v1085 = vsub.s32 %v1082, %v1084
        %v1086 = vrot.slane %v1072, %v1085
        %v1087 = vcombine.low %v1022, %v1038
        %v1088 = vcombine.high %v1022, %v1038
        %v1090 = vunpack.c.l.s4 1934713408
        %v1091 = vunpack.c.0.s8 %v1090
        %v1092 = vlaneseq
        %v1093 = vshrl.u32 %v1092, 7
        %v1094 = vsub.s32 %v1091, %v1093
        %v1095 = vrot.slane %v1087, %v1094
        %v1097 = vunpack.c.l.s4 1934713408
        %v1098 = vunpack.c.0.s8 %v1097
        %v1099 = vlaneseq
        %v1100 = vshrl.u32 %v1099, 7
        %v1101 = vsub.s32 %v1098, %v1100
        %v1102 = vrot.slane %v1088, %v1101
        %v1103 = vcombine.low %v1047, %v1063
        %v1104 = vcombine.high %v1047, %v1063
        %v1106 = vunpack.c.l.s4 1934713408
        %v1107 = vunpack.c.0.s8 %v1106
        %v1108 = vlaneseq
        %v1109 = vshrl.u32 %v1108, 7
        %v1110 = vsub.s32 %v1107, %v1109
        %v1111 = vrot.slane %v1103, %v1110
        %v1113 = vunpack.c.l.s4 1934713408
        %v1114 = vunpack.c.0.s8 %v1113
        %v1115 = vlaneseq
        %v1116 = vshrl.u32 %v1115, 7
        %v1117 = vsub.s32 %v1114, %v1116
        %v1118 = vrot.slane %v1104, %v1117
        %v1119 = vcombine.low %v1054, %v1070
        %v1120 = vcombine.high %v1054, %v1070
        %v1122 = vunpack.c.l.s4 1934713408
        %v1123 = vunpack.c.0.s8 %v1122
        %v1124 = vlaneseq
        %v1125 = vshrl.u32 %v1124, 7
        %v1126 = vsub.s32 %v1123, %v1125
        %v1127 = vrot.slane %v1119, %v1126
        %v1129 = vunpack.c.l.s4 1934713408
        %v1130 = vunpack.c.0.s8 %v1129
        %v1131 = vlaneseq
        %v1132 = vshrl.u32 %v1131, 7
        %v1133 = vsub.s32 %v1130, %v1132
        %v1134 = vrot.slane %v1120, %v1133
        %v1135 = vcombine.low %v1079, %v1111
        %v1136 = vcombine.high %v1079, %v1111
        %v1137 = vcombine.low %v1086, %v1118
        %v1138 = vcombine.high %v1086, %v1118
        %v1139 = vcombine.low %v1095, %v1127
        %v1140 = vcombine.high %v1095, %v1127
        %v1141 = vcombine.low %v1102, %v1134
        %v1142 = vcombine.high %v1102, %v1134
        %1159 = vrot.lane.b32.xlu0 %v999, 4
        %v1160 = vpop.permute.xlu0 %1159
        %1161 = vrot.lane.b32.xlu0 %v1135, 4
        %v1162 = vpop.permute.xlu0 %1161
        %1163 = vrot.lane.b32.xlu0 %v1000, 4
        %v1164 = vpop.permute.xlu0 %1163
        %1165 = vrot.lane.b32.xlu0 %v1136, 4
        %v1166 = vpop.permute.xlu0 %1165
        %1167 = vrot.lane.b32.xlu0 %v1001, 4
        %v1168 = vpop.permute.xlu0 %1167
        %1169 = vrot.lane.b32.xlu0 %v1137, 4
        %v1170 = vpop.permute.xlu0 %1169
        %1171 = vrot.lane.b32.xlu0 %v1002, 4
        %v1172 = vpop.permute.xlu0 %1171
        %1173 = vrot.lane.b32.xlu0 %v1138, 4
        %v1174 = vpop.permute.xlu0 %1173
        %1175 = vrot.lane.b32.xlu0 %v1003, 4
        %v1176 = vpop.permute.xlu0 %1175
        %1177 = vrot.lane.b32.xlu0 %v1139, 4
        %v1178 = vpop.permute.xlu0 %1177
        %1179 = vrot.lane.b32.xlu0 %v1004, 4
        %v1180 = vpop.permute.xlu0 %1179
        %1181 = vrot.lane.b32.xlu0 %v1140, 4
        %v1182 = vpop.permute.xlu0 %1181
        %1183 = vrot.lane.b32.xlu0 %v1005, 4
        %v1184 = vpop.permute.xlu0 %1183
        %1185 = vrot.lane.b32.xlu0 %v1141, 4
        %v1186 = vpop.permute.xlu0 %1185
        %1187 = vrot.lane.b32.xlu0 %v1006, 4
        %v1188 = vpop.permute.xlu0 %1187
        %1189 = vrot.lane.b32.xlu0 %v1142, 4
        %v1190 = vpop.permute.xlu0 %1189
        %vm1207 = vcmask 31744
        %v1208 = vsel %vm1207, %v682, %v1160
        %v1209 = vsel %vm1207, %v818, %v1162
        %v1210 = vsel %vm1207, %v683, %v1164
        %v1211 = vsel %vm1207, %v819, %v1166
        %v1212 = vsel %vm1207, %v684, %v1168
        %v1213 = vsel %vm1207, %v820, %v1170
        %v1214 = vsel %vm1207, %v685, %v1172
        %v1215 = vsel %vm1207, %v821, %v1174
        %v1216 = vsel %vm1207, %v686, %v1176
        %v1217 = vsel %vm1207, %v822, %v1178
        %v1218 = vsel %vm1207, %v687, %v1180
        %v1219 = vsel %vm1207, %v823, %v1182
        %v1220 = vsel %vm1207, %v688, %v1184
        %v1221 = vsel %vm1207, %v824, %v1186
        %v1222 = vsel %vm1207, %v689, %v1188
        %v1223 = vsel %vm1207, %v825, %v1190
        %v1224 = vcombine.low %v1208, %v1212
        %v1225 = vcombine.high %v1208, %v1212
        %v1227 = vunpack.c.l.s4 1983009808
        %v1228 = vunpack.c.0.s8 %v1227
        %v1229 = vlaneseq
        %v1230 = vshrl.u32 %v1229, 7
        %v1231 = vsub.s32 %v1228, %v1230
        %v1232 = vrot.slane %v1224, %v1231
        %v1234 = vunpack.c.l.s4 1983009808
        %v1235 = vunpack.c.0.s8 %v1234
        %v1236 = vlaneseq
        %v1237 = vshrl.u32 %v1236, 7
        %v1238 = vsub.s32 %v1235, %v1237
        %v1239 = vrot.slane %v1225, %v1238
        %v1240 = vcombine.low %v1210, %v1214
        %v1241 = vcombine.high %v1210, %v1214
        %v1243 = vunpack.c.l.s4 1983009808
        %v1244 = vunpack.c.0.s8 %v1243
        %v1245 = vlaneseq
        %v1246 = vshrl.u32 %v1245, 7
        %v1247 = vsub.s32 %v1244, %v1246
        %v1248 = vrot.slane %v1240, %v1247
        %v1250 = vunpack.c.l.s4 1983009808
        %v1251 = vunpack.c.0.s8 %v1250
        %v1252 = vlaneseq
        %v1253 = vshrl.u32 %v1252, 7
        %v1254 = vsub.s32 %v1251, %v1253
        %v1255 = vrot.slane %v1241, %v1254
        %v1256 = vcombine.low %v1216, %v1220
        %v1257 = vcombine.high %v1216, %v1220
        %v1259 = vunpack.c.l.s4 1983009808
        %v1260 = vunpack.c.0.s8 %v1259
        %v1261 = vlaneseq
        %v1262 = vshrl.u32 %v1261, 7
        %v1263 = vsub.s32 %v1260, %v1262
        %v1264 = vrot.slane %v1256, %v1263
        %v1266 = vunpack.c.l.s4 1983009808
        %v1267 = vunpack.c.0.s8 %v1266
        %v1268 = vlaneseq
        %v1269 = vshrl.u32 %v1268, 7
        %v1270 = vsub.s32 %v1267, %v1269
        %v1271 = vrot.slane %v1257, %v1270
        %v1272 = vcombine.low %v1218, %v1222
        %v1273 = vcombine.high %v1218, %v1222
        %v1275 = vunpack.c.l.s4 1983009808
        %v1276 = vunpack.c.0.s8 %v1275
        %v1277 = vlaneseq
        %v1278 = vshrl.u32 %v1277, 7
        %v1279 = vsub.s32 %v1276, %v1278
        %v1280 = vrot.slane %v1272, %v1279
        %v1282 = vunpack.c.l.s4 1983009808
        %v1283 = vunpack.c.0.s8 %v1282
        %v1284 = vlaneseq
        %v1285 = vshrl.u32 %v1284, 7
        %v1286 = vsub.s32 %v1283, %v1285
        %v1287 = vrot.slane %v1273, %v1286
        %v1288 = vcombine.low %v1232, %v1248
        %v1289 = vcombine.high %v1232, %v1248
        %v1291 = vunpack.c.l.s4 1934713408
        %v1292 = vunpack.c.0.s8 %v1291
        %v1293 = vlaneseq
        %v1294 = vshrl.u32 %v1293, 7
        %v1295 = vsub.s32 %v1292, %v1294
        %v1296 = vrot.slane %v1288, %v1295
        %v1298 = vunpack.c.l.s4 1934713408
        %v1299 = vunpack.c.0.s8 %v1298
        %v1300 = vlaneseq
        %v1301 = vshrl.u32 %v1300, 7
        %v1302 = vsub.s32 %v1299, %v1301
        %v1303 = vrot.slane %v1289, %v1302
        %v1304 = vcombine.low %v1239, %v1255
        %v1305 = vcombine.high %v1239, %v1255
        %v1307 = vunpack.c.l.s4 1934713408
        %v1308 = vunpack.c.0.s8 %v1307
        %v1309 = vlaneseq
        %v1310 = vshrl.u32 %v1309, 7
        %v1311 = vsub.s32 %v1308, %v1310
        %v1312 = vrot.slane %v1304, %v1311
        %v1314 = vunpack.c.l.s4 1934713408
        %v1315 = vunpack.c.0.s8 %v1314
        %v1316 = vlaneseq
        %v1317 = vshrl.u32 %v1316, 7
        %v1318 = vsub.s32 %v1315, %v1317
        %v1319 = vrot.slane %v1305, %v1318
        %v1320 = vcombine.low %v1264, %v1280
        %v1321 = vcombine.high %v1264, %v1280
        %v1323 = vunpack.c.l.s4 1934713408
        %v1324 = vunpack.c.0.s8 %v1323
        %v1325 = vlaneseq
        %v1326 = vshrl.u32 %v1325, 7
        %v1327 = vsub.s32 %v1324, %v1326
        %v1328 = vrot.slane %v1320, %v1327
        %v1330 = vunpack.c.l.s4 1934713408
        %v1331 = vunpack.c.0.s8 %v1330
        %v1332 = vlaneseq
        %v1333 = vshrl.u32 %v1332, 7
        %v1334 = vsub.s32 %v1331, %v1333
        %v1335 = vrot.slane %v1321, %v1334
        %v1336 = vcombine.low %v1271, %v1287
        %v1337 = vcombine.high %v1271, %v1287
        %v1339 = vunpack.c.l.s4 1934713408
        %v1340 = vunpack.c.0.s8 %v1339
        %v1341 = vlaneseq
        %v1342 = vshrl.u32 %v1341, 7
        %v1343 = vsub.s32 %v1340, %v1342
        %v1344 = vrot.slane %v1336, %v1343
        %v1346 = vunpack.c.l.s4 1934713408
        %v1347 = vunpack.c.0.s8 %v1346
        %v1348 = vlaneseq
        %v1349 = vshrl.u32 %v1348, 7
        %v1350 = vsub.s32 %v1347, %v1349
        %v1351 = vrot.slane %v1337, %v1350
        %v1352 = vcombine.low %v1296, %v1328
        %v1353 = vcombine.high %v1296, %v1328
        %v1354 = vcombine.low %v1303, %v1335
        %v1355 = vcombine.high %v1303, %v1335
        %v1356 = vcombine.low %v1312, %v1344
        %v1357 = vcombine.high %v1312, %v1344
        %v1358 = vcombine.low %v1319, %v1351
        %v1359 = vcombine.high %v1319, %v1351
        %v1360 = vcombine.low %v1209, %v1213
        %v1361 = vcombine.high %v1209, %v1213
        %v1363 = vunpack.c.l.s4 1983009808
        %v1364 = vunpack.c.0.s8 %v1363
        %v1365 = vlaneseq
        %v1366 = vshrl.u32 %v1365, 7
        %v1367 = vsub.s32 %v1364, %v1366
        %v1368 = vrot.slane %v1360, %v1367
        %v1370 = vunpack.c.l.s4 1983009808
        %v1371 = vunpack.c.0.s8 %v1370
        %v1372 = vlaneseq
        %v1373 = vshrl.u32 %v1372, 7
        %v1374 = vsub.s32 %v1371, %v1373
        %v1375 = vrot.slane %v1361, %v1374
        %v1376 = vcombine.low %v1211, %v1215
        %v1377 = vcombine.high %v1211, %v1215
        %v1379 = vunpack.c.l.s4 1983009808
        %v1380 = vunpack.c.0.s8 %v1379
        %v1381 = vlaneseq
        %v1382 = vshrl.u32 %v1381, 7
        %v1383 = vsub.s32 %v1380, %v1382
        %v1384 = vrot.slane %v1376, %v1383
        %v1386 = vunpack.c.l.s4 1983009808
        %v1387 = vunpack.c.0.s8 %v1386
        %v1388 = vlaneseq
        %v1389 = vshrl.u32 %v1388, 7
        %v1390 = vsub.s32 %v1387, %v1389
        %v1391 = vrot.slane %v1377, %v1390
        %v1392 = vcombine.low %v1217, %v1221
        %v1393 = vcombine.high %v1217, %v1221
        %v1395 = vunpack.c.l.s4 1983009808
        %v1396 = vunpack.c.0.s8 %v1395
        %v1397 = vlaneseq
        %v1398 = vshrl.u32 %v1397, 7
        %v1399 = vsub.s32 %v1396, %v1398
        %v1400 = vrot.slane %v1392, %v1399
        %v1402 = vunpack.c.l.s4 1983009808
        %v1403 = vunpack.c.0.s8 %v1402
        %v1404 = vlaneseq
        %v1405 = vshrl.u32 %v1404, 7
        %v1406 = vsub.s32 %v1403, %v1405
        %v1407 = vrot.slane %v1393, %v1406
        %v1408 = vcombine.low %v1219, %v1223
        %v1409 = vcombine.high %v1219, %v1223
        %v1411 = vunpack.c.l.s4 1983009808
        %v1412 = vunpack.c.0.s8 %v1411
        %v1413 = vlaneseq
        %v1414 = vshrl.u32 %v1413, 7
        %v1415 = vsub.s32 %v1412, %v1414
        %v1416 = vrot.slane %v1408, %v1415
        %v1418 = vunpack.c.l.s4 1983009808
        %v1419 = vunpack.c.0.s8 %v1418
        %v1420 = vlaneseq
        %v1421 = vshrl.u32 %v1420, 7
        %v1422 = vsub.s32 %v1419, %v1421
        %v1423 = vrot.slane %v1409, %v1422
        %v1424 = vcombine.low %v1368, %v1384
        %v1425 = vcombine.high %v1368, %v1384
        %v1427 = vunpack.c.l.s4 1934713408
        %v1428 = vunpack.c.0.s8 %v1427
        %v1429 = vlaneseq
        %v1430 = vshrl.u32 %v1429, 7
        %v1431 = vsub.s32 %v1428, %v1430
        %v1432 = vrot.slane %v1424, %v1431
        %v1434 = vunpack.c.l.s4 1934713408
        %v1435 = vunpack.c.0.s8 %v1434
        %v1436 = vlaneseq
        %v1437 = vshrl.u32 %v1436, 7
        %v1438 = vsub.s32 %v1435, %v1437
        %v1439 = vrot.slane %v1425, %v1438
        %v1440 = vcombine.low %v1375, %v1391
        %v1441 = vcombine.high %v1375, %v1391
        %v1443 = vunpack.c.l.s4 1934713408
        %v1444 = vunpack.c.0.s8 %v1443
        %v1445 = vlaneseq
        %v1446 = vshrl.u32 %v1445, 7
        %v1447 = vsub.s32 %v1444, %v1446
        %v1448 = vrot.slane %v1440, %v1447
        %v1450 = vunpack.c.l.s4 1934713408
        %v1451 = vunpack.c.0.s8 %v1450
        %v1452 = vlaneseq
        %v1453 = vshrl.u32 %v1452, 7
        %v1454 = vsub.s32 %v1451, %v1453
        %v1455 = vrot.slane %v1441, %v1454
        %v1456 = vcombine.low %v1400, %v1416
        %v1457 = vcombine.high %v1400, %v1416
        %v1459 = vunpack.c.l.s4 1934713408
        %v1460 = vunpack.c.0.s8 %v1459
        %v1461 = vlaneseq
        %v1462 = vshrl.u32 %v1461, 7
        %v1463 = vsub.s32 %v1460, %v1462
        %v1464 = vrot.slane %v1456, %v1463
        %v1466 = vunpack.c.l.s4 1934713408
        %v1467 = vunpack.c.0.s8 %v1466
        %v1468 = vlaneseq
        %v1469 = vshrl.u32 %v1468, 7
        %v1470 = vsub.s32 %v1467, %v1469
        %v1471 = vrot.slane %v1457, %v1470
        %v1472 = vcombine.low %v1407, %v1423
        %v1473 = vcombine.high %v1407, %v1423
        %v1475 = vunpack.c.l.s4 1934713408
        %v1476 = vunpack.c.0.s8 %v1475
        %v1477 = vlaneseq
        %v1478 = vshrl.u32 %v1477, 7
        %v1479 = vsub.s32 %v1476, %v1478
        %v1480 = vrot.slane %v1472, %v1479
        %v1482 = vunpack.c.l.s4 1934713408
        %v1483 = vunpack.c.0.s8 %v1482
        %v1484 = vlaneseq
        %v1485 = vshrl.u32 %v1484, 7
        %v1486 = vsub.s32 %v1483, %v1485
        %v1487 = vrot.slane %v1473, %v1486
        %v1488 = vcombine.low %v1432, %v1464
        %v1489 = vcombine.high %v1432, %v1464
        %v1490 = vcombine.low %v1439, %v1471
        %v1491 = vcombine.high %v1439, %v1471
        %v1492 = vcombine.low %v1448, %v1480
        %v1493 = vcombine.high %v1448, %v1480
        %v1494 = vcombine.low %v1455, %v1487
        %v1495 = vcombine.high %v1455, %v1487
        %1497 = vrot.lane.b32.xlu0 %v1353, 8
        %v1498 = vpop.permute.xlu0 %1497
        %1501 = vrot.lane.b32.xlu0 %v1354, 16
        %v1502 = vpop.permute.xlu0 %1501
        %1505 = vrot.lane.b32.xlu0 %v1355, 24
        %v1506 = vpop.permute.xlu0 %1505
        %1509 = vrot.lane.b32.xlu0 %v1356, 32
        %v1510 = vpop.permute.xlu0 %1509
        %1513 = vrot.lane.b32.xlu0 %v1357, 40
        %v1514 = vpop.permute.xlu0 %1513
        %1517 = vrot.lane.b32.xlu0 %v1358, 48
        %v1518 = vpop.permute.xlu0 %1517
        %1521 = vrot.lane.b32.xlu0 %v1359, 56
        %v1522 = vpop.permute.xlu0 %1521
        %1525 = vrot.lane.b32.xlu0 %v1488, 64
        %v1526 = vpop.permute.xlu0 %1525
        %1529 = vrot.lane.b32.xlu0 %v1489, 72
        %v1530 = vpop.permute.xlu0 %1529
        %1533 = vrot.lane.b32.xlu0 %v1490, 80
        %v1534 = vpop.permute.xlu0 %1533
        %1537 = vrot.lane.b32.xlu0 %v1491, 88
        %v1538 = vpop.permute.xlu0 %1537
        %1541 = vrot.lane.b32.xlu0 %v1492, 96
        %v1542 = vpop.permute.xlu0 %1541
        %1545 = vrot.lane.b32.xlu0 %v1493, 104
        %v1546 = vpop.permute.xlu0 %1545
        %1549 = vrot.lane.b32.xlu0 %v1494, 112
        %v1550 = vpop.permute.xlu0 %1549
        %1553 = vrot.lane.b32.xlu0 %v1495, 120
        %v1554 = vpop.permute.xlu0 %1553
        %vm1556 = vcmask 64512
        %v1557 = vsel %vm1556, %v1352, %v1498
        %vm1558 = vcmask 130048
        %v1559 = vsel %vm1558, %v1557, %v1502
        %vm1560 = vcmask 195584
        %v1561 = vsel %vm1560, %v1559, %v1506
        %vm1562 = vcmask 261120
        %v1563 = vsel %vm1562, %v1561, %v1510
        %vm1564 = vcmask 326656
        %v1565 = vsel %vm1564, %v1563, %v1514
        %vm1566 = vcmask 392192
        %v1567 = vsel %vm1566, %v1565, %v1518
        %vm1568 = vcmask 457728
        %v1569 = vsel %vm1568, %v1567, %v1522
        %v1570 = vsel %vm270, %v1569, %v1526
        %vm1571 = vcmask 588800
        %v1572 = vsel %vm1571, %v1570, %v1530
        %vm1573 = vcmask 654336
        %v1574 = vsel %vm1573, %v1572, %v1534
        %vm1575 = vcmask 719872
        %v1576 = vsel %vm1575, %v1574, %v1538
        %vm1577 = vcmask 785408
        %v1578 = vsel %vm1577, %v1576, %v1542
        %vm1579 = vcmask 850944
        %v1580 = vsel %vm1579, %v1578, %v1546
        %vm1581 = vcmask 916480
        %v1582 = vsel %vm1581, %v1580, %v1550
        %vm1583 = vcmask 982016
        %v1584 = vsel %vm1583, %v1582, %v1554
        %1585 = vst [vmem:[%s217] sm:$0xff] %v1584
        %s1586 = sand.u32 %s111, 1
        %s1587 = scalar_lea.sflag [#allocation4], %s1586
        %s1588 = sand.u32 %s111, 1
        %s1589 = smul.addr %s1588, 8
        %s1590 = scalar_lea.vmem [#allocation7], %s1589
        // Predicated region
        $region41: #{tpu_custom_call.1} parent=31 // pred_check
          %p1591 = pneg %p121
        $region42: #{tpu_custom_call.1} parent=31 // pred_check_branch
          %1593 = sbr.rel (%p1591) target = $region44
        $region43: #{tpu_custom_call.1} parent=31 // pred_region
          %s1595 = ssub.s32 128, 128
          %1596 = vsyncadd %s1587, %s1595
          %s1597 = smul.addr %s25, 2
          %s1598 = sadd.s32 %s26, %s1597
          %s1599 = smul.addr %s1598, 128
          %s1600 = scalar_lea.hbm %s3, %s1599
          %s1602 = sshll.u32 %s1590, 4
          %s1603 = int_to_ptr.vmem [resolvable:$true] %s1602
          %1605 = dma.vmem_to_hbm [thread:$0]  %s1603, 128, %s1600, %s1587
        $region44: #{tpu_custom_call.1} parent=31 // pred_fallthru
          _
      $region32: #{tpu_custom_call.1} parent=5 // pred_fallthru
        _
      %p1606 = scmp.le.s32.totalorder 2, %s16
      // Predicated region
      $region45: #{tpu_custom_call.1} parent=5 // pred_check
        %p1607 = pneg %p1606
      $region46: #{tpu_custom_call.1} parent=5 // pred_check_branch
        %1609 = sbr.rel (%p1607) target = $region48
      $region47: #{tpu_custom_call.1} parent=5 // pred_region
        %s1610 = ssub.s32 %s16, 2
        // Predicated region
        $region49: #{tpu_custom_call.1} parent=47 // pred_check
          %p1611 = pneg %p127
        $region50: #{tpu_custom_call.1} parent=47 // pred_check_branch
          %1613 = sbr.rel (%p1611) target = $region52
        $region51: #{tpu_custom_call.1} parent=47 // pred_region
          %s1614 = sand.u32 %s112, 1
          %s1615 = scalar_lea.sflag [#allocation4], %s1614
          %s1616 = sand.u32 %s112, 1
          %s1617 = smul.addr %s1616, 8
          %s1618 = scalar_lea.vmem [#allocation7], %s1617
          %1619 = dma.done %s1615, 128
        $region52: #{tpu_custom_call.1} parent=47 // pred_fallthru
          _
      $region48: #{tpu_custom_call.1} parent=5 // pred_fallthru
        _
    $region6: #{tpu_custom_call.1} parent=1 // loop_footer
      %s20 = sadd.s32 1, %s16
    $region7: #{tpu_custom_call.1} parent=1 // loop_footer_branch
      %15 = sbr.rel target = $region3
    $region8: #{tpu_custom_call.1} parent=1 // loop_exit
      _
    %1620 = vsyncpa [#allocation3], 1
    %s1621 = scalar_lea.sflag [#allocation3], 1
    %1622 = vsyncpa %s1621, 1
    %1623 = vsyncpa [#allocation6], 1
    %1624 = vsyncpa [#allocation4], 1
    %s1625 = scalar_lea.sflag [#allocation4], 1
    %1626 = vsyncpa %s1625, 1

</llo_original>
